<compile_context>
chip_gen: v7x
topology: tpu7x:2x2x1
jax: 0.10.0
libtpu: 0.0.40
codegen_flags: <defaults>
</compile_context>

<pallas_src>
import jax
import jax.numpy as jnp
from jax.experimental import pallas as pl
from jax.experimental.pallas import tpu as pltpu


def linear_kernel(x_ref, params_ref, o_ref):
    # x_ref:      (2, T) f32 in VMEM  — features on sublanes, batch on lanes
    # params_ref: (3,)   f32 in SMEM  — [w0, w1, b]
    # o_ref:      (1, T) f32 in VMEM  — lane-dense output tile
    w0 = params_ref[0]
    w1 = params_ref[1]
    b = params_ref[2]
    x0 = x_ref[0:1, :]          # (1, T)
    x1 = x_ref[1:2, :]          # (1, T)
    # Two scalar-broadcast multiplies + two adds per lane: pure VALU work,
    # no XLU reduction, no masked partial stores.
    o_ref[...] = x0 * w0 + x1 * w1 + b


def linear_forward(x, weight, bias, *, max_tile=8192):
    """x: (B, 2) f32, weight: (1, 2) f32, bias: (1,) f32 -> (B, 1) f32.

    max_tile: cap on the lane-dense batch tile (multiple of 128). The actual
    tile is min(max_tile, round_up(B, 128)) so tiny batches run in a single
    grid step while large batches get big blocks for pipelining efficiency.
    """
    B, in_features = x.shape          # in_features == 2
    out_features = weight.shape[0]    # == 1

    lanes = 128
    b_rounded = pl.cdiv(B, lanes) * lanes          # multiple of 128
    tile = min(max_tile, b_rounded)                # multiple of 128
    Bp = pl.cdiv(B, tile) * tile                   # multiple of tile

    # Pad batch up to a multiple of the lane tile and transpose so batch is
    # the last (lane) dimension. Cheap wrapper-side layout plumbing.
    xt = jnp.pad(x.astype(jnp.float32).T, ((0, 0), (0, Bp - B)))   # (2, Bp)

    # Pack weight + bias as 3 scalars for SMEM.
    params = jnp.concatenate(
        [weight.reshape(-1), bias.reshape(-1)]
    ).astype(jnp.float32)                                          # (3,)

    out_t = pl.pallas_call(
        linear_kernel,
        out_shape=jax.ShapeDtypeStruct((out_features, Bp), jnp.float32),
        grid=(Bp // tile,),
        in_specs=[
            # (2, tile): sublane dim equals the full array dim (2), lane dim
            # is a multiple of 128 -> satisfies the (8,128) tiling rule.
            pl.BlockSpec((in_features, tile), lambda i: (0, i)),
            # weight/bias: whole tiny array straight into SMEM (scalar path).
            pl.BlockSpec(memory_space=pltpu.MemorySpace.SMEM),
        ],
        out_specs=pl.BlockSpec((out_features, tile), lambda i: (0, i)),
        compiler_params=pltpu.CompilerParams(
            dimension_semantics=("parallel",),   # batch tiles are independent
        ),
    )(xt, params)

    # Undo padding / transpose: (1, Bp) -> (B, 1), matching nn.Linear output.
    return out_t[:, :B].T


if __name__ == "__main__":
    key = jax.random.PRNGKey(0)
    k_w, k_b = jax.random.split(key, 2)

    in_features, out_features = 2, 1

    # Deterministic init mimicking PyTorch nn.Linear default: U(-1/sqrt(in), 1/sqrt(in))
    bound = 1.0 / jnp.sqrt(jnp.float32(in_features))
    weight = jax.random.uniform(
        k_w, (out_features, in_features), jnp.float32, -bound, bound
    )
    bias = jax.random.uniform(k_b, (out_features,), jnp.float32, -bound, bound)

    # Same input as the PyTorch spec: batch=2, features=2.
    x = jnp.array([[1.0, 2.0], [3.0, 4.0]], dtype=jnp.float32)

    out = linear_forward(x, weight, bias)
    jax.block_until_ready(out)

    # Reference check against plain JAX (same math as torch.nn.Linear forward).
    ref = x @ weight.T + bias
    assert out.shape == (2, 1), out.shape
    assert jnp.allclose(out, ref, atol=1e-6), (out, ref)

    print("KERNEL_OK")
</pallas_src>

<mosaic_0001>
module attributes {stable_mosaic.version = 11 : i64} {
  func.func @linear_kernel(%arg0: i32, %arg1: memref<2x128xf32, #tpu.memory_space<vmem>>, %arg2: memref<3xf32, #tpu.memory_space<smem>>, %arg3: memref<1x128xf32, #tpu.memory_space<vmem>>) attributes {dimension_semantics = [#tpu.dimension_semantics<parallel>], iteration_bounds = array<i64: 1>, scalar_prefetch = 0 : i64, scratch_operands = 0 : i64, tpu.core_type = #tpu.core_type<tc>, window_params = [{transform_indices = @transform_0, window_bounds = array<i64: 2, 128>}, {transform_indices = @transform_1, window_bounds = array<i64: 3>}, {transform_indices = @transform_2, window_bounds = array<i64: 1, 128>}]} {
    %c0 = arith.constant 0 : index
    %0 = memref.load %arg2[%c0] : memref<3xf32, #tpu.memory_space<smem>>
    %c1 = arith.constant 1 : index
    %1 = memref.load %arg2[%c1] : memref<3xf32, #tpu.memory_space<smem>>
    %c2 = arith.constant 2 : index
    %2 = memref.load %arg2[%c2] : memref<3xf32, #tpu.memory_space<smem>>
    %c0_0 = arith.constant 0 : index
    %c0_1 = arith.constant 0 : index
    %3 = vector.load %arg1[%c0_0, %c0_1] : memref<2x128xf32, #tpu.memory_space<vmem>>, vector<1x128xf32>
    %c1_2 = arith.constant 1 : index
    %c0_3 = arith.constant 0 : index
    %4 = vector.load %arg1[%c1_2, %c0_3] : memref<2x128xf32, #tpu.memory_space<vmem>>, vector<1x128xf32>
    %5 = vector.broadcast %0 : f32 to vector<1x128xf32>
    %6 = arith.mulf %3, %5 : vector<1x128xf32>
    %7 = vector.broadcast %1 : f32 to vector<1x128xf32>
    %8 = arith.mulf %4, %7 : vector<1x128xf32>
    %9 = arith.addf %6, %8 : vector<1x128xf32>
    %10 = vector.broadcast %2 : f32 to vector<1x128xf32>
    %11 = arith.addf %9, %10 : vector<1x128xf32>
    %c0_4 = arith.constant 0 : index
    %c0_5 = arith.constant 0 : index
    %12 = vector.load %arg3[%c0_4, %c0_5] : memref<1x128xf32, #tpu.memory_space<vmem>>, vector<1x128xf32>
    tpu.vector_store %arg3[%c0_4, %c0_5], %11 {strides = array<i32>} : memref<1x128xf32, #tpu.memory_space<vmem>>, vector<1x128xf32>,
    return
  }
  func.func @transform_0(%arg0: i32) -> (i32, i32) {
    %c0_i32 = arith.constant 0 : i32
    %c0_i32_0 = arith.constant 0 : i32
    return %c0_i32, %arg0 : i32, i32
  }
  func.func @transform_1(%arg0: i32) -> i32 {
    %c0_i32 = arith.constant 0 : i32
    %c0_i32_0 = arith.constant 0 : i32
    return %c0_i32 : i32
  }
  func.func @transform_2(%arg0: i32) -> (i32, i32) {
    %c0_i32 = arith.constant 0 : i32
    %c0_i32_0 = arith.constant 0 : i32
    return %c0_i32, %arg0 : i32, i32
  }
}

</mosaic_0001>

<llo_original>
// kernel: tpu_custom_call.1
$region0: #{tpu_custom_call.1}
  #allocation0 [shape = 'u32[]', space=smem, size = 0x4, offset = 0x4, fixed_abs, tag = 'smem constant byte address 0x4 - core index']
  #allocation1 [shape = 'u32[144,128]{1,0:T(1,128)}', space=vmem, size = 0x12000, scoped, tag = 'internal scratch']
  %s0 = inlined_call_operand.hbm [shape: f32[2,128], index: 0, kind: input, shape index: {}]
  %s1 = inlined_call_operand.vmem [shape: f32[3], index: 1, kind: input, shape index: {}]
  %s2 = inlined_call_operand.hbm [shape: f32[1,128], index: 2, kind: output, shape index: {}]
  %s3 = sld [smem:[#allocation0]]
  $region26: #{tpu_custom_call.1} parent=0
    _
  %s5 = ssub.s32 1, %s3
  %s6 = scalar_select 0, %s5, %s3
  $region1: #{tpu_custom_call.1} parent=0
    #allocation2 [shape = 'u8[1024]{0}', space=vmem, size = 0x400, scoped, tag = 'input window, operand 0, single buffered']
    #allocation3 [shape = 's32[1]{0}', space=sflag, size = 0x4, scoped, tag = 'scoped memory for tpu_custom_call.1']
    #allocation4 [shape = 's32[1]{0}', space=sflag, size = 0x4, scoped, tag = 'scoped memory for tpu_custom_call.1']
    #allocation5 [shape = 's32[1]{0}', space=sflag, size = 0x4, scoped, tag = 'scoped memory for tpu_custom_call.1']
    #allocation6 [shape = 'u8[512]{0}', space=smem, size = 0x200, scoped, tag = 'input window, operand 1, single buffered']
    #allocation7 [shape = 'u8[512]{0}', space=vmem, size = 0x400, scoped, tag = 'output window, operand 0, single buffered']
    %7 = vsyncpa [#allocation3], 0
    %8 = vsyncpa [#allocation5], 0
    %9 = vsyncpa [#allocation4], 0
    // Predicated region
    $region2: #{tpu_custom_call.1} parent=1 // pred_check
      _
    $region3: #{tpu_custom_call.1} parent=1 // pred_check_branch
      %11 = sbr.rel (0) target = $region5
    $region4: #{tpu_custom_call.1} parent=1 // pred_region
      %s13 = ssub.s32 32, 32
      %14 = vsyncadd [#allocation3], %s13
      %s16 = sshll.u32 [#allocation2], 4
      %s17 = int_to_ptr.vmem [resolvable:$true] %s16
      %19 = dma.hbm_to_vmem [thread:$0]  %s0, 32, %s17, [#allocation3]
    $region5: #{tpu_custom_call.1} parent=1 // pred_fallthru
      _
    // Predicated region
    $region6: #{tpu_custom_call.1} parent=1 // pred_check
      _
    $region7: #{tpu_custom_call.1} parent=1 // pred_check_branch
      %21 = sbr.rel (0) target = $region9
    $region8: #{tpu_custom_call.1} parent=1 // pred_region
      %s23 = ssub.s32 16, 16
      %24 = vsyncadd [#allocation5], %s23
      %s26 = sshll.u32 %s1, 4
      %s27 = int_to_ptr.vmem [resolvable:$true] %s26
      %29 = dma.vmem_to_smem %s27, 16, [#allocation6], [#allocation5]
    $region9: #{tpu_custom_call.1} parent=1 // pred_fallthru
      _
    // Predicated region
    $region10: #{tpu_custom_call.1} parent=1 // pred_check
      _
    $region11: #{tpu_custom_call.1} parent=1 // pred_check_branch
      %31 = sbr.rel (0) target = $region13
    $region12: #{tpu_custom_call.1} parent=1 // pred_region
      %32 = dma.done [#allocation3], 32
    $region13: #{tpu_custom_call.1} parent=1 // pred_fallthru
      _
    // Predicated region
    $region14: #{tpu_custom_call.1} parent=1 // pred_check
      _
    $region15: #{tpu_custom_call.1} parent=1 // pred_check_branch
      %34 = sbr.rel (0) target = $region17
    $region16: #{tpu_custom_call.1} parent=1 // pred_region
      %35 = dma.done [#allocation5], 16
    $region17: #{tpu_custom_call.1} parent=1 // pred_fallthru
      _
    %36 = sfence
    %s37 = sld [smem:[#allocation6]]
    %s38 = sld [smem:[#allocation6 + $0x1]]
    %s39 = sld [smem:[#allocation6 + $0x2]]
    %v40 = vld [vmem:[#allocation2] sm:$0x1]
    %v41 = vld [vmem:[#allocation2 + $0x1] sm:$0x1]
    %v42 = vstv %s37
    %v43 = vmul.f32 %v40, %v42
    %v44 = vstv %s38
    %v45 = vmul.f32 %v41, %v44
    %v46 = vadd.f32 %v43, %v45
    %v47 = vstv %s39
    %v48 = vadd.f32 %v46, %v47
    %49 = vst [vmem:[#allocation7] sm:$0x1] %v48
    // Predicated region
    $region18: #{tpu_custom_call.1} parent=1 // pred_check
      _
    $region19: #{tpu_custom_call.1} parent=1 // pred_check_branch
      %51 = sbr.rel (0) target = $region21
    $region20: #{tpu_custom_call.1} parent=1 // pred_region
      %s53 = ssub.s32 16, 16
      %54 = vsyncadd [#allocation4], %s53
      %s56 = sshll.u32 [#allocation7], 4
      %s57 = int_to_ptr.vmem [resolvable:$true] %s56
      %59 = dma.vmem_to_hbm [thread:$0]  %s57, 16, %s2, [#allocation4]
    $region21: #{tpu_custom_call.1} parent=1 // pred_fallthru
      _
    // Predicated region
    $region22: #{tpu_custom_call.1} parent=1 // pred_check
      _
    $region23: #{tpu_custom_call.1} parent=1 // pred_check_branch
      %61 = sbr.rel (0) target = $region25
    $region24: #{tpu_custom_call.1} parent=1 // pred_region
      %62 = dma.done [#allocation4], 16
    $region25: #{tpu_custom_call.1} parent=1 // pred_fallthru
      _
    %63 = vsyncpa [#allocation3], 1
    %64 = vsyncpa [#allocation4], 1
    %65 = vsyncpa [#allocation5], 1

</llo_original>
